<compile_context>
chip_gen: v6e
topology: v6e:2x2x1
jax: 0.10.0
libtpu: 0.0.40
codegen_flags: <defaults>
</compile_context>

<pallas_src>
import math
import numpy as np
import jax
import jax.numpy as jnp
from jax import lax
from jax.experimental import pallas as pl
from jax.experimental.pallas import tpu as pltpu


def _round_up(x, m):
    return ((x + m - 1) // m) * m


def _cdiv(a, b):
    return (a + b - 1) // b


# -----------------------------------------------------------------------------
# Pallas kernel: per-tile loss partial sum (channel-major, lane-dense layout)
# -----------------------------------------------------------------------------
def _make_kernel(nclass, nc_pad):
    def kernel(packed_ref, out_ref):
        f32 = jnp.float32
        # Group A (8-aligned): class logits on the sublane axis.
        prob = packed_ref[0:nc_pad, :].astype(f32)                 # (nc_pad, TL)
        # Group B (8-aligned start): per-row scalars.
        a0 = nc_pad
        conf = packed_ref[a0 + 0:a0 + 1, :].astype(f32)            # (1, TL)
        cm = packed_ref[a0 + 1:a0 + 2, :].astype(f32)              # coord mask
        cfm = packed_ref[a0 + 2:a0 + 3, :].astype(f32)             # conf mask
        pos = packed_ref[a0 + 3:a0 + 4, :].astype(f32)             # pos mask
        label = packed_ref[a0 + 4:a0 + 5, :]                       # class label
        # Group C (exactly one 8-sublane tile): box channels.
        b0 = nc_pad + 8
        feat_xy = packed_ref[b0 + 0:b0 + 2, :].astype(f32)         # (2, TL)
        feat_wh = packed_ref[b0 + 2:b0 + 4, :].astype(f32)
        m_xy = packed_ref[b0 + 4:b0 + 6, :].astype(f32)
        m_wh = packed_ref[b0 + 6:b0 + 8, :].astype(f32)

        # Factored-mask squared errors (loc + conf). Sigmoid only on xy (EUP).
        d_xy = cm * (jax.nn.sigmoid(feat_xy) - m_xy)               # (2, TL)
        d_wh = cm * (feat_wh - m_wh)                               # (2, TL)
        d_cf = cfm * (conf - pos)                                  # (1, TL)

        # Masked class cross-entropy; padded class sublanes neutralized so the
        # aligned nc_pad block needs no partial-sublane slicing.
        cls_idx = lax.broadcasted_iota(jnp.int32, prob.shape, 0)
        valid = cls_idx < nclass
        logits = jnp.where(valid, prob, -1e30)
        mx = jnp.max(logits, axis=0, keepdims=True)
        lse = mx + jnp.log(jnp.sum(jnp.exp(logits - mx), axis=0, keepdims=True))
        picked = jnp.sum(
            jnp.where(cls_idx == label.astype(jnp.int32), prob, 0.0),
            axis=0, keepdims=True)

        # Fuse everything into one per-lane vector (sublane sums are cheap),
        # then exactly ONE cross-lane reduction per tile.
        per_lane = (0.5 * (jnp.sum(d_xy * d_xy + d_wh * d_wh,
                                   axis=0, keepdims=True) + d_cf * d_cf)
                    + pos * (lse - picked))                        # (1, TL)
        partial = jnp.sum(per_lane)
        out_ref[...] = jnp.full((1, 128), partial, dtype=jnp.float32)
    return kernel


def yolo_loss_pallas(packed, nclass, nc_pad, num, tile_lanes):
    c_pad, n_pad = packed.shape
    assert n_pad % tile_lanes == 0 and tile_lanes % 128 == 0
    assert c_pad % 8 == 0
    n_tiles = n_pad // tile_lanes

    out = pl.pallas_call(
        _make_kernel(nclass, nc_pad),
        out_shape=jax.ShapeDtypeStruct((1, 128 * n_tiles), jnp.float32),
        grid_spec=pltpu.PrefetchScalarGridSpec(
            num_scalar_prefetch=0,
            grid=(n_tiles,),
            in_specs=[pl.BlockSpec((c_pad, tile_lanes), lambda i: (0, i))],
            out_specs=pl.BlockSpec((1, 128), lambda i: (0, i)),
        ),
        compiler_params=pltpu.CompilerParams(
            dimension_semantics=("parallel",)),   # megacore-friendly on v7x
    )(packed)

    partials = out.reshape(n_tiles, 128)[:, 0]
    return jnp.sum(partials) / num


# -----------------------------------------------------------------------------
# Tile selection (per-step-overhead amortization + v7x megacore + v5e VMEM cap)
# -----------------------------------------------------------------------------
_VMEM_TILE_BUDGET = 8 * 1024 * 1024   # double-buffered input block <= ~8 MiB


def _choose_tiling(n_rows, c_pad, itemsize, max_tile_lanes):
    cap = max(128, ((_VMEM_TILE_BUDGET // (2 * c_pad * itemsize)) // 128) * 128)
    limit = max(128, min(max_tile_lanes, cap))
    n_rows = max(n_rows, 1)
    if n_rows <= 256:
        # Tiny problem: one small tile; splitting only adds per-step overhead.
        tl = _round_up(n_rows, 128)
        return tl, tl
    if n_rows <= 2 * limit:
        # Two equal tiles so the "parallel" axis splits across both v7x TCs.
        tl = _round_up(_cdiv(n_rows, 2), 128)
        return tl, 2 * tl
    tl = limit
    n_tiles = _cdiv(n_rows, tl)
    if n_tiles % 2:
        n_tiles += 1  # even tile count -> clean 2-way megacore split on v7x
    return tl, n_tiles * tl


# -----------------------------------------------------------------------------
# JAX glue: box utilities + target assignment (mask building)
# -----------------------------------------------------------------------------
def point_form(boxes):
    # (cx, cy, w, h) -> (xmin, ymin, xmax, ymax)
    return jnp.concatenate([boxes[:, :2] - boxes[:, 2:] / 2,
                            boxes[:, :2] + boxes[:, 2:] / 2], axis=1)


def jaccard(box_a, box_b):
    max_xy = jnp.minimum(box_a[:, None, 2:], box_b[None, :, 2:])
    min_xy = jnp.maximum(box_a[:, None, :2], box_b[None, :, :2])
    inter = jnp.clip(max_xy - min_xy, 0.0)
    inter = inter[..., 0] * inter[..., 1]
    area_a = ((box_a[:, 2] - box_a[:, 0]) * (box_a[:, 3] - box_a[:, 1]))[:, None]
    area_b = ((box_b[:, 2] - box_b[:, 0]) * (box_b[:, 3] - box_b[:, 1]))[None, :]
    return inter / (area_a + area_b - inter)


def build_masks(box_pred_i, target_i, anchors, f_size, object_scale, warm):
    s2, a = box_pred_i.shape[0], box_pred_i.shape[1]
    f32 = jnp.float32

    bp = point_form(box_pred_i.reshape(-1, 4))
    best_truth_overlap = jnp.max(jaccard(bp, target_i[:, :4]), axis=1)

    conf_mask = jnp.ones((s2, a, 1), f32)
    conf_mask = jnp.where((best_truth_overlap > 0.5).reshape(s2, a, 1),
                          0.0, conf_mask)
    coord_mask = jnp.zeros((s2, a, 1), f32)
    pos_mask = jnp.zeros((s2, a, 1), f32)
    m_boxes = jnp.zeros((s2, a, 5), f32)
    if warm:
        coord_mask = jnp.ones_like(coord_mask)
        m_boxes = m_boxes.at[..., 0:2].set(0.5)

    t_xy = (target_i[:, :2] + target_i[:, 2:4]) * f_size / 2
    t_wh = (target_i[:, 2:4] - target_i[:, :2]) * f_size
    xy = jnp.floor(t_xy).astype(jnp.int32)
    pos = xy[:, 1] * f_size + xy[:, 0]

    wh = t_wh / 2
    target_box = jnp.concatenate([-wh, wh], axis=1)
    awh = anchors / 2
    anchor_box = jnp.concatenate([-awh, awh], axis=1)
    best_prior_idx = jnp.argmax(jaccard(target_box, anchor_box), axis=1)

    coord_mask = coord_mask.at[pos, best_prior_idx, 0].set(1.0)
    pos_mask = pos_mask.at[pos, best_prior_idx, 0].set(1.0)
    conf_mask = conf_mask.at[pos, best_prior_idx, 0].set(object_scale)
    mvals = jnp.concatenate(
        [t_xy - xy.astype(f32),
         jnp.log(t_wh / anchors[best_prior_idx]),
         target_i[:, 4:5]], axis=1)
    m_boxes = m_boxes.at[pos, best_prior_idx].set(mvals)
    return coord_mask, conf_mask, pos_mask, m_boxes


def _build_all_masks(box_pred, targets, anchors, f_size, object_scale, warm):
    return jax.vmap(
        lambda bp, tg: build_masks(bp, tg, anchors, f_size, object_scale, warm)
    )(box_pred, targets)


def yolo_loss_forward(preds, targets, cfg, warm=False,
                      max_tile_lanes=16384, pack_dtype=jnp.float32):
    feat, box_pred, box_conf, box_prob = preds
    anchors = jnp.asarray(cfg['ANCHORS'], jnp.float32).reshape(-1, 2)
    nclass = cfg['CLASS_NUMS']
    object_scale = float(cfg['OBJECT_SCALE'])

    num = feat.shape[0]
    f_size = int(math.sqrt(feat.shape[1]))

    coord_mask, conf_mask, pos_mask, m_boxes = _build_all_masks(
        box_pred, targets, anchors, f_size, object_scale, warm)

    n_rows = num * feat.shape[1] * feat.shape[2]
    nc_pad = _round_up(nclass, 8)
    c_pad = nc_pad + 16

    # Direct channel-major construction: transpose the small (n_rows, k)
    # streams and concat along the sublane axis — no scatter-pad, no full-slab
    # transpose afterwards.
    def chan(x, k):
        return x.reshape(n_rows, k).T.astype(pack_dtype)

    def zrows(k):
        return jnp.zeros((k, n_rows), pack_dtype)

    groups = [chan(box_prob, nclass)]
    if nc_pad > nclass:
        groups.append(zrows(nc_pad - nclass))
    groups += [
        chan(box_conf, 1),            # conf
        chan(coord_mask, 1),          # cm
        chan(conf_mask, 1),           # cfm
        chan(pos_mask, 1),            # pos
        chan(m_boxes[..., 4:5], 1),   # label
        zrows(3),                     # pad group B to 8 sublanes
        chan(feat[..., 0:2], 2),      # feat_xy
        chan(feat[..., 2:4], 2),      # feat_wh
        chan(m_boxes[..., 0:2], 2),   # m_xy
        chan(m_boxes[..., 2:4], 2),   # m_wh
    ]
    packed = jnp.concatenate(groups, axis=0)                    # (c_pad, n_rows)
    assert packed.shape[0] == c_pad

    tl, n_pad = _choose_tiling(n_rows, c_pad, jnp.dtype(pack_dtype).itemsize,
                               max_tile_lanes)
    if n_pad > n_rows:
        packed = jnp.pad(packed, ((0, 0), (0, n_pad - n_rows)))

    return yolo_loss_pallas(packed, nclass, nc_pad, num, tl)


def yolo_loss_reference(feat_f, conf_f, prob_f, cmask_f, cfmask_f, pmask_f,
                        mcoord_f, mlabel_f, num):
    """Pure-JAX reference of the loss reduction (same math as the kernel)."""
    box_match = jnp.concatenate([jax.nn.sigmoid(feat_f[:, :2]),
                                 feat_f[:, 2:4]], axis=1)
    loc = jnp.sum((cmask_f * box_match - cmask_f * mcoord_f) ** 2) / 2
    conf = jnp.sum((cfmask_f * conf_f - cfmask_f * pmask_f) ** 2) / 2
    lse = jax.nn.logsumexp(prob_f, axis=-1, keepdims=True)
    picked = jnp.take_along_axis(prob_f, mlabel_f.astype(jnp.int32), axis=-1)
    ce = jnp.sum(pmask_f * (lse - picked))
    return (loc + conf + ce) / num


# -----------------------------------------------------------------------------
# Demo
# -----------------------------------------------------------------------------
if __name__ == "__main__":
    CFG = dict(ANCHORS=[1.0, 1.0, 2.0, 2.0, 1.5, 3.0, 3.0, 1.5],
               CLASS_NUMS=8,
               NO_OBJECT_SCALE=1.0,
               OBJECT_SCALE=5.0,
               CLASS_SCALE=1.0,
               COORD_SCALE=1.0)

    num = 2            # batch
    f_size = 4         # feature map is f_size x f_size
    s2 = f_size * f_size
    A = len(CFG['ANCHORS']) // 2
    nclass = CFG['CLASS_NUMS']

    key = jax.random.PRNGKey(0)
    k1, k2, k3, k4 = jax.random.split(key, 4)
    feat = jax.random.normal(k1, (num, s2, A, 4), jnp.float32)
    # decoded boxes (cx, cy, w, h) in normalized image coords
    box_pred = jax.random.uniform(k2, (num, s2, A, 4), jnp.float32,
                                  minval=0.05, maxval=0.95)
    box_pred = box_pred * jnp.array([1.0, 1.0, 0.3, 0.3], jnp.float32)
    box_conf = jax.random.uniform(k3, (num, s2, A, 1), jnp.float32)
    box_prob = jax.random.normal(k4, (num, s2, A, nclass), jnp.float32)

    # Deterministic ground-truth targets: (num, T, 5) = (xmin, ymin, xmax, ymax, class)
    centers = jnp.array([[[0.5, 0.5], [2.5, 1.5], [3.5, 3.5]],
                         [[1.5, 0.5], [0.5, 2.5], [2.5, 3.5]]],
                        jnp.float32) / f_size
    wh = jnp.array([[[0.15, 0.20], [0.25, 0.15], [0.20, 0.20]],
                    [[0.20, 0.15], [0.15, 0.25], [0.22, 0.18]]], jnp.float32)
    labels = jnp.array([[1.0, 3.0, 5.0], [0.0, 2.0, 7.0]],
                       jnp.float32)[..., None]
    targets = jnp.concatenate([centers - wh / 2, centers + wh / 2, labels],
                              axis=-1)

    loss = yolo_loss_forward((feat, box_pred, box_conf, box_prob),
                             targets, CFG, warm=False)
    loss = jax.block_until_ready(loss)

    # Self-check against a pure-JAX reference of the same reduction.
    anchors = jnp.asarray(CFG['ANCHORS'], jnp.float32).reshape(-1, 2)
    coord_mask, conf_mask, pos_mask, m_boxes = _build_all_masks(
        box_pred, targets, anchors, f_size, float(CFG['OBJECT_SCALE']), False)
    n_rows = num * s2 * A
    ref = yolo_loss_reference(
        feat.reshape(n_rows, 4), box_conf.reshape(n_rows, 1),
        box_prob.reshape(n_rows, nclass), coord_mask.reshape(n_rows, 1),
        conf_mask.reshape(n_rows, 1), pos_mask.reshape(n_rows, 1),
        m_boxes[..., :4].reshape(n_rows, 4),
        m_boxes[..., 4:5].reshape(n_rows, 1), num)
    ref = jax.block_until_ready(ref)

    if not np.allclose(np.asarray(loss), np.asarray(ref), rtol=1e-4, atol=1e-4):
        raise AssertionError(f"mismatch: pallas={loss} ref={ref}")

    print("KERNEL_OK")
</pallas_src>

<mosaic_0001>
module attributes {stable_mosaic.version = 11 : i64} {
  func.func @kernel(%arg0: i32, %arg1: memref<24x128xf32, #tpu.memory_space<vmem>>, %arg2: memref<1x128xf32, #tpu.memory_space<vmem>>) attributes {dimension_semantics = [#tpu.dimension_semantics<parallel>], iteration_bounds = array<i64: 1>, scalar_prefetch = 0 : i64, scratch_operands = 0 : i64, tpu.core_type = #tpu.core_type<tc>, window_params = [{transform_indices = @transform_0, window_bounds = array<i64: 24, 128>}, {transform_indices = @transform_1, window_bounds = array<i64: 1, 128>}]} {
    %c0 = arith.constant 0 : index
    %c0_0 = arith.constant 0 : index
    %0 = vector.load %arg1[%c0, %c0_0] : memref<24x128xf32, #tpu.memory_space<vmem>>, vector<8x128xf32>
    %c8 = arith.constant 8 : index
    %c0_1 = arith.constant 0 : index
    %1 = vector.load %arg1[%c8, %c0_1] : memref<24x128xf32, #tpu.memory_space<vmem>>, vector<1x128xf32>
    %c9 = arith.constant 9 : index
    %c0_2 = arith.constant 0 : index
    %2 = vector.load %arg1[%c9, %c0_2] : memref<24x128xf32, #tpu.memory_space<vmem>>, vector<1x128xf32>
    %c10 = arith.constant 10 : index
    %c0_3 = arith.constant 0 : index
    %3 = vector.load %arg1[%c10, %c0_3] : memref<24x128xf32, #tpu.memory_space<vmem>>, vector<1x128xf32>
    %c11 = arith.constant 11 : index
    %c0_4 = arith.constant 0 : index
    %4 = vector.load %arg1[%c11, %c0_4] : memref<24x128xf32, #tpu.memory_space<vmem>>, vector<1x128xf32>
    %c12 = arith.constant 12 : index
    %c0_5 = arith.constant 0 : index
    %5 = vector.load %arg1[%c12, %c0_5] : memref<24x128xf32, #tpu.memory_space<vmem>>, vector<1x128xf32>
    %c16 = arith.constant 16 : index
    %c0_6 = arith.constant 0 : index
    %6 = vector.load %arg1[%c16, %c0_6] : memref<24x128xf32, #tpu.memory_space<vmem>>, vector<2x128xf32>
    %c18 = arith.constant 18 : index
    %c0_7 = arith.constant 0 : index
    %7 = vector.load %arg1[%c18, %c0_7] : memref<24x128xf32, #tpu.memory_space<vmem>>, vector<2x128xf32>
    %c20 = arith.constant 20 : index
    %c0_8 = arith.constant 0 : index
    %8 = vector.load %arg1[%c20, %c0_8] : memref<24x128xf32, #tpu.memory_space<vmem>>, vector<2x128xf32>
    %c22 = arith.constant 22 : index
    %c0_9 = arith.constant 0 : index
    %9 = vector.load %arg1[%c22, %c0_9] : memref<24x128xf32, #tpu.memory_space<vmem>>, vector<2x128xf32>
    %10 = arith.negf %6 : vector<2x128xf32>
    %11 = math.exp %10 : vector<2x128xf32>
    %cst = arith.constant 1.000000e+00 : f32
    %12 = vector.broadcast %cst : f32 to vector<2x128xf32>
    %13 = arith.addf %12, %11 : vector<2x128xf32>
    %14 = arith.divf %12, %13 : vector<2x128xf32>
    %15 = arith.subf %14, %8 : vector<2x128xf32>
    %16 = vector.broadcast %2 : vector<1x128xf32> to vector<2x128xf32>
    %17 = arith.mulf %16, %15 : vector<2x128xf32>
    %18 = arith.subf %7, %9 : vector<2x128xf32>
    %19 = vector.broadcast %2 : vector<1x128xf32> to vector<2x128xf32>
    %20 = arith.mulf %19, %18 : vector<2x128xf32>
    %21 = arith.subf %1, %4 : vector<1x128xf32>
    %22 = arith.mulf %3, %21 : vector<1x128xf32>
    %23 = tpu.iota {dimensions = array<i32: 0>} : vector<8x128xi32>
    %c8_i32 = arith.constant 8 : i32
    %24 = vector.broadcast %c8_i32 : i32 to vector<8x128xi32>
    %25 = arith.cmpi slt, %23, %24 : vector<8x128xi32>
    %cst_10 = arith.constant -1.000000e+30 : f32
    %26 = vector.broadcast %cst_10 : f32 to vector<8x128xf32>
    %27 = arith.select %25, %0, %26 : vector<8x128xi1>, vector<8x128xf32>
    %cst_11 = arith.constant dense<0xFF800000> : vector<128xf32>
    %28 = vector.multi_reduction <maximumf>, %27, %cst_11 [0] : vector<8x128xf32> to vector<128xf32>
    %29 = vector.shape_cast %28 : vector<128xf32> to vector<1x128xf32>
    %30 = vector.broadcast %29 : vector<1x128xf32> to vector<8x128xf32>
    %31 = arith.subf %27, %30 : vector<8x128xf32>
    %32 = math.exp %31 : vector<8x128xf32>
    %cst_12 = arith.constant dense<0.000000e+00> : vector<128xf32>
    %33 = vector.multi_reduction <add>, %32, %cst_12 [0] : vector<8x128xf32> to vector<128xf32>
    %34 = vector.shape_cast %33 : vector<128xf32> to vector<1x128xf32>
    %35 = math.log %34 : vector<1x128xf32>
    %36 = arith.addf %29, %35 : vector<1x128xf32>
    %37 = arith.fptosi %5 : vector<1x128xf32> to vector<1x128xi32>
    %38 = vector.broadcast %37 : vector<1x128xi32> to vector<8x128xi32>
    %39 = arith.cmpi eq, %23, %38 : vector<8x128xi32>
    %cst_13 = arith.constant 0.000000e+00 : f32
    %40 = vector.broadcast %cst_13 : f32 to vector<8x128xf32>
    %41 = arith.select %39, %0, %40 : vector<8x128xi1>, vector<8x128xf32>
    %cst_14 = arith.constant dense<0.000000e+00> : vector<128xf32>
    %42 = vector.multi_reduction <add>, %41, %cst_14 [0] : vector<8x128xf32> to vector<128xf32>
    %43 = vector.shape_cast %42 : vector<128xf32> to vector<1x128xf32>
    %44 = arith.mulf %17, %17 : vector<2x128xf32>
    %45 = arith.mulf %20, %20 : vector<2x128xf32>
    %46 = arith.addf %44, %45 : vector<2x128xf32>
    %cst_15 = arith.constant dense<0.000000e+00> : vector<128xf32>
    %47 = vector.multi_reduction <add>, %46, %cst_15 [0] : vector<2x128xf32> to vector<128xf32>
    %48 = vector.shape_cast %47 : vector<128xf32> to vector<1x128xf32>
    %49 = arith.mulf %22, %22 : vector<1x128xf32>
    %50 = arith.addf %48, %49 : vector<1x128xf32>
    %cst_16 = arith.constant 5.000000e-01 : f32
    %51 = vector.broadcast %cst_16 : f32 to vector<1x128xf32>
    %52 = arith.mulf %51, %50 : vector<1x128xf32>
    %53 = arith.subf %36, %43 : vector<1x128xf32>
    %54 = arith.mulf %4, %53 : vector<1x128xf32>
    %55 = arith.addf %52, %54 : vector<1x128xf32>
    %56 = vector.shape_cast %55 : vector<1x128xf32> to vector<1x1x128xf32>
    %cst_17 = arith.constant dense<0.000000e+00> : vector<1xf32>
    %57 = vector.multi_reduction <add>, %56, %cst_17 [1, 2] : vector<1x1x128xf32> to vector<1xf32>
    %58 = vector.shape_cast %57 : vector<1xf32> to vector<1x1x1xf32>
    %59 = vector.extract %58[0, 0, 0] : f32 from vector<1x1x1xf32>
    %60 = vector.broadcast %59 : f32 to vector<1x128xf32>
    %c0_18 = arith.constant 0 : index
    %c0_19 = arith.constant 0 : index
    %61 = vector.load %arg2[%c0_18, %c0_19] : memref<1x128xf32, #tpu.memory_space<vmem>>, vector<1x128xf32>
    tpu.vector_store %arg2[%c0_18, %c0_19], %60 {strides = array<i32>} : memref<1x128xf32, #tpu.memory_space<vmem>>, vector<1x128xf32>,
    return
  }
  func.func @transform_0(%arg0: i32) -> (i32, i32) {
    %c0_i32 = arith.constant 0 : i32
    %c0_i32_0 = arith.constant 0 : i32
    return %c0_i32, %arg0 : i32, i32
  }
  func.func @transform_1(%arg0: i32) -> (i32, i32) {
    %c0_i32 = arith.constant 0 : i32
    %c0_i32_0 = arith.constant 0 : i32
    return %c0_i32, %arg0 : i32, i32
  }
}

</mosaic_0001>

<llo_original>
// kernel: tpu_custom_call.1
$region0: #{tpu_custom_call.1}
  #allocation0 [shape = 'u32[]', space=smem, size = 0x4, offset = 0x4, fixed_abs, tag = 'smem constant byte address 0x4 - core index']
  #allocation1 [shape = 'u32[144,128]{1,0:T(1,128)}', space=vmem, size = 0x12000, scoped, tag = 'internal scratch']
  %s0 = inlined_call_operand.hbm [shape: f32[24,128], index: 0, kind: input, shape index: {}]
  %s1 = inlined_call_operand.hbm [shape: f32[1,128], index: 1, kind: output, shape index: {}]
  %s2 = sld [smem:[#allocation0]]
  $region18: #{tpu_custom_call.1} parent=0
    _
  %s4 = ssub.s32 1, %s2
  %s5 = scalar_select 0, %s4, %s2
  $region1: #{tpu_custom_call.1} parent=0
    #allocation2 [shape = 'u8[12288]{0}', space=vmem, size = 0x3000, scoped, tag = 'input window, operand 0, single buffered']
    #allocation3 [shape = 's32[1]{0}', space=sflag, size = 0x4, scoped, tag = 'scoped memory for tpu_custom_call.1']
    #allocation4 [shape = 's32[1]{0}', space=sflag, size = 0x4, scoped, tag = 'scoped memory for tpu_custom_call.1']
    #allocation5 [shape = 'u8[512]{0}', space=vmem, size = 0x400, scoped, tag = 'output window, operand 0, single buffered']
    %6 = vsyncpa [#allocation3], 0
    %7 = vsyncpa [#allocation4], 0
    // Predicated region
    $region2: #{tpu_custom_call.1} parent=1 // pred_check
      _
    $region3: #{tpu_custom_call.1} parent=1 // pred_check_branch
      %9 = sbr.rel (0) target = $region5
    $region4: #{tpu_custom_call.1} parent=1 // pred_region
      %s11 = ssub.s32 384, 384
      %12 = vsyncadd [#allocation3], %s11
      %s13 = sshll.u32 [#allocation2], 4
      %s14 = int_to_ptr.vmem [resolvable:$true] %s13
      %19 = dma.hbm_to_vmem [thread:$0]  %s0, 384, %s14, [#allocation3], 128, 128, 8
    $region5: #{tpu_custom_call.1} parent=1 // pred_fallthru
      _
    // Predicated region
    $region6: #{tpu_custom_call.1} parent=1 // pred_check
      _
    $region7: #{tpu_custom_call.1} parent=1 // pred_check_branch
      %21 = sbr.rel (0) target = $region9
    $region8: #{tpu_custom_call.1} parent=1 // pred_region
      %22 = dma.done [#allocation3], 384
    $region9: #{tpu_custom_call.1} parent=1 // pred_fallthru
      _
    %v23 = vld [vmem:[#allocation2] sm:$0xff]
    %v24 = vld [vmem:[#allocation2 + $0x8] sm:$0x1]
    %v25 = vld [vmem:[#allocation2 + $0x9] sm:$0x1]
    %v26 = vld [vmem:[#allocation2 + $0xa] sm:$0x1]
    %v27 = vld [vmem:[#allocation2 + $0xb] sm:$0x1]
    %v28 = vld [vmem:[#allocation2 + $0xc] sm:$0x1]
    %v29 = vld [vmem:[#allocation2 + $0x10] sm:$0x3]
    %v30 = vld [vmem:[#allocation2 + $0x12] sm:$0x3]
    %v31 = vld [vmem:[#allocation2 + $0x14] sm:$0x3]
    %v32 = vld [vmem:[#allocation2 + $0x16] sm:$0x3]
    %v33 = vxor.u32 %v29, 2147483648
    %v34 = vmul.f32 %v33, 1.442695
    %v35 = vpow.pop %v34
    %v36 = vadd.f32 %v35, 1.0
    %v37 = vrcp.pop %v36
    %v38 = vmul.f32 1.0, %v37
    %v39 = vsub.f32 %v38, %v31
    %v40 = vlaneseq
    %v41 = vshrl.u32 %v40, 7
    %v42 = vsub.s32 0, %v41
    %v43 = vrot.slane %v25, %v42
    %v44 = vmul.f32 %v43, %v39
    %v45 = vsub.f32 %v30, %v32
    %v46 = vmul.f32 %v43, %v45
    %v47 = vsub.f32 %v24, %v27
    %v48 = vmul.f32 %v26, %v47
    %v49 = vlaneseq
    %v50 = vshrl.u32 %v49, 7
    %vm51 = vcmp.lt.s32.totalorder %v50, 8
    %v52 = vsel %vm51, %v23, -1e+30
    %v53 = vrot.slane %v52, 4
    %v54 = vmax.f32 %v52, %v53
    %v55 = vrot.slane %v54, 2
    %v56 = vmax.f32 %v54, %v55
    %v57 = vrot.slane %v56, 1
    %v58 = vmax.f32 %v56, %v57
    %v59 = vsub.f32 %v52, %v58
    %v60 = vmul.f32 %v59, 1.442695
    %v61 = vpow.pop %v60
    %v62 = vrot.slane %v61, 4
    %v63 = vadd.f32 %v61, %v62
    %v64 = vrot.slane %v63, 2
    %v65 = vadd.f32 %v63, %v64
    %v66 = vrot.slane %v65, 1
    %v67 = vadd.f32 %v65, %v66
    %v68 = vlog2.pop %v67
    %v69 = vmul.f32 %v68, 0.6931472
    %v70 = vadd.f32 %v58, %v69
    %v71 = vcvt.f32.s32.to.zero.pseudo %v28
    %v72 = vlaneseq
    %v73 = vshrl.u32 %v72, 7
    %v74 = vsub.s32 0, %v73
    %v75 = vrot.slane %v71, %v74
    %vm76 = vcmp.eq.s32.totalorder %v50, %v75
    %v77 = vsel %vm76, %v23, 0.0
    %v78 = vrot.slane %v77, 4
    %v79 = vadd.f32 %v77, %v78
    %v80 = vrot.slane %v79, 2
    %v81 = vadd.f32 %v79, %v80
    %v82 = vrot.slane %v81, 1
    %v83 = vadd.f32 %v81, %v82
    %v84 = vmul.f32 %v44, %v44
    %v85 = vmul.f32 %v46, %v46
    %v86 = vadd.f32 %v84, %v85
    %vm87 = vcmask 1041408
    %v88 = vsel %vm87, %v86, 0.0
    %v89 = vrot.slane %v88, 4
    %v90 = vadd.f32 %v88, %v89
    %v91 = vrot.slane %v90, 2
    %v92 = vadd.f32 %v90, %v91
    %v93 = vrot.slane %v92, 1
    %v94 = vadd.f32 %v92, %v93
    %v95 = vmul.f32 %v48, %v48
    %v96 = vadd.f32 %v94, %v95
    %v97 = vmul.f32 %v96, 0.5
    %v98 = vsub.f32 %v70, %v83
    %v99 = vmul.f32 %v27, %v98
    %v100 = vadd.f32 %v97, %v99
    %vm101 = vcmask 1040384
    %v102 = vsel %vm101, %v100, 0.0
    %103 = vadd.xlane.f32.xlu0 %v102
    %v104 = vpop.xlane.xlu0 %103
    %v105 = vrot.slane %v104, 4
    %v106 = vadd.f32 %v104, %v105
    %v107 = vrot.slane %v106, 2
    %v108 = vadd.f32 %v106, %v107
    %v109 = vrot.slane %v108, 1
    %v110 = vadd.f32 %v108, %v109
    %s111 = vtos %v110
    %v112 = vstv %s111
    %113 = vst [vmem:[#allocation5] sm:$0x1] %v112
    // Predicated region
    $region10: #{tpu_custom_call.1} parent=1 // pred_check
      _
    $region11: #{tpu_custom_call.1} parent=1 // pred_check_branch
      %115 = sbr.rel (0) target = $region13
    $region12: #{tpu_custom_call.1} parent=1 // pred_region
      %s117 = ssub.s32 16, 16
      %118 = vsyncadd [#allocation4], %s117
      %s120 = sshll.u32 [#allocation5], 4
      %s121 = int_to_ptr.vmem [resolvable:$true] %s120
      %123 = dma.vmem_to_hbm [thread:$0]  %s121, 16, %s1, [#allocation4]
    $region13: #{tpu_custom_call.1} parent=1 // pred_fallthru
      _
    // Predicated region
    $region14: #{tpu_custom_call.1} parent=1 // pred_check
      _
    $region15: #{tpu_custom_call.1} parent=1 // pred_check_branch
      %125 = sbr.rel (0) target = $region17
    $region16: #{tpu_custom_call.1} parent=1 // pred_region
      %126 = dma.done [#allocation4], 16
    $region17: #{tpu_custom_call.1} parent=1 // pred_fallthru
      _
    %127 = vsyncpa [#allocation3], 1
    %128 = vsyncpa [#allocation4], 1

</llo_original>
